<compile_context>
chip_gen: v6e
topology: v6e:2x2x1
jax: 0.10.0
libtpu: 0.0.40
codegen_flags: <defaults>
</compile_context>

<pallas_src>
import numpy as np
import jax
import jax.numpy as jnp
from jax.experimental import pallas as pl
from jax.experimental.pallas import tpu as pltpu

EPS = 0.001


# ----------------------------- Pallas kernel --------------------------------
def pca_recon_kernel(ct_ref, qt_ref, aux_ref, o_ref):
    """out^T[3, Npad] = exp(c^T @ Q^T) * A - B   (A, B precomputed at init)."""
    # MXU: bf16 in / f32 accumulate. The cast of the tiny [3, nb] parameter is
    # done here (free on VPU slack) instead of as a separate XLA op per step.
    mapped = jnp.dot(ct_ref[...].astype(jnp.bfloat16), qt_ref[...],
                     preferred_element_type=jnp.float32)          # [3, Npad]
    # Epilogue in f32 (v5e has no bf16 VPU/EUP); exp goes to the EUP slot.
    o_ref[...] = jnp.exp(mapped) * aux_ref[0] - aux_ref[1]


def pca_recon_full_T(ct, qt_bf16, aux_t, n_full):
    """Full-table reconstruction, transposed (lane-dense) layout.

    ct       [3, nb]        PCA coefficients, transposed (trainable), f32
    qt_bf16  [nb, Npad]     pre-scattered Q^T (zero columns on unmasked rows)
    aux_t    [2, 3, Npad]   stacked (A^T, B^T); A = exp(off)*(median+EPS)/cos,
                            B = EPS/cos, both 0 on unmasked / padding columns
    returns  [3, n_full]    unmasked reconstruction (zeros where mask is False)
    """
    nb, npad = qt_bf16.shape
    cost = pl.CostEstimate(
        flops=2 * 3 * nb * npad + 2 * 3 * npad,        # matmul + mul/sub
        transcendentals=3 * npad,                      # exp
        bytes_accessed=(ct.size * 4 + qt_bf16.size * 2
                        + aux_t.size * 4 + 3 * npad * 4),
    )
    vmem = pl.BlockSpec(memory_space=pltpu.MemorySpace.VMEM)
    out_t = pl.pallas_call(
        pca_recon_kernel,
        out_shape=jax.ShapeDtypeStruct((3, npad), jnp.float32),
        in_specs=[vmem, vmem, vmem],          # whole-array blocks, no grid
        out_specs=vmem,
        cost_estimate=cost,
    )(ct, qt_bf16, aux_t)
    return out_t[:, :n_full]


# --------------------------- PCA module (JAX) --------------------------------
class PCAJax:
    """Synthetic, deterministic stand-in for nbrdf.PCA (no .npy / .pt loads)."""

    def __init__(self, key, TH=8, TD=8, PD=16, basis_num=32):
        self.TH, self.TD, self.PD = TH, TD, PD
        self.n_full = TH * TD * PD
        self.n = basis_num

        # deterministic boolean mask over the flattened BRDF table
        mask_np = (np.arange(self.n_full) % 3 != 0)
        self.maskMap = jnp.asarray(mask_np)
        self.mask_idx = jnp.asarray(np.nonzero(mask_np)[0], dtype=jnp.int32)
        M = int(mask_np.sum())

        k1, k2, k3, k4 = jax.random.split(key, 4)
        self.Q = 0.05 * jax.random.normal(k1, (M, basis_num), jnp.float32)
        self.relativeOffset = 0.1 * jax.random.normal(k2, (M, 3), jnp.float32)
        self.median = jax.random.uniform(k3, (M, 3), jnp.float32, 0.0, 1.0)
        self.cosMap = jax.random.uniform(k4, (M, 3), jnp.float32, 0.1, 1.0)

        # Trainable parameter, stored transposed ([3, nb] == zeros(n,3).T) so
        # the kernel needs no per-call transpose/cast op on it.
        # NOTE: Q (and c once trained away from zero) are quantized to bf16
        # before the contraction; the error enters pre-exp and is acceptable
        # only under the loose tolerance used here.
        self.cT = jnp.zeros((3, basis_num), jnp.float32)

        # --- one-time precompute: transposed, full-table, lane-dense operands.
        # Epilogue constants are folded:  A = exp(off)*(median+EPS)/cosMap,
        # B = EPS/cosMap, so the kernel is exp(Q@c)*A - B.  Unmasked / padding
        # columns get Q = A = B = 0 => kernel output is exactly 0 there, i.e.
        # _PCA.unmask is fused into the operands.  Padding to a lane multiple
        # is done once, here only.
        npad = ((self.n_full + 127) // 128) * 128
        self.npad = npad
        idx = self.mask_idx
        self.QT = (jnp.zeros((basis_num, npad), jnp.float32)
                   .at[:, idx].set(self.Q.T)).astype(jnp.bfloat16)
        A = jnp.exp(self.relativeOffset) * (self.median + EPS) / self.cosMap
        B = EPS / self.cosMap
        a_t = jnp.zeros((3, npad), jnp.float32).at[:, idx].set(A.T)
        b_t = jnp.zeros((3, npad), jnp.float32).at[:, idx].set(B.T)
        self.auxT = jnp.stack([a_t, b_t], axis=0)      # [2, 3, Npad]

    # --- reconstruction -------------------------------------------------------
    def _reconT(self):
        return pca_recon_full_T(self.cT, self.QT, self.auxT, self.n_full)

    def getBRDFTensor(self):
        # derived-class semantics: full table [n_full, 3], unmasked rows = -1
        recon = self._reconT().T
        return jnp.where(self.maskMap[:, None], recon, -1.0)

    # --- forward --------------------------------------------------------------
    def _merl_flat_index(self, theta_h, theta_d, phi_d):
        # TODO(synk): Merl.merl_lookup source not provided; standard MERL
        # half-diff nearest-neighbour indexing used as a stand-in for the
        # `higher=True` interpolated lookup.
        th_i = jnp.clip(jnp.floor(jnp.sqrt(theta_h / (jnp.pi / 2)) * self.TH),
                        0, self.TH - 1).astype(jnp.int32)
        td_i = jnp.clip(jnp.floor(theta_d / (jnp.pi / 2) * self.TD),
                        0, self.TD - 1).astype(jnp.int32)
        pd = jnp.where(phi_d < 0, phi_d + jnp.pi, phi_d)
        pd_i = jnp.clip(jnp.floor(pd / jnp.pi * self.PD),
                        0, self.PD - 1).astype(jnp.int32)
        return (th_i * self.TD + td_i) * self.PD + pd_i

    def forward(self, x):
        # Per the perf review: don't rebuild the full table for a tiny lookup;
        # gather only the B needed columns and evaluate them in plain JAX.
        theta_h, theta_d, phi_d = x[:, 0], x[:, 1], x[:, 2]
        flat = self._merl_flat_index(theta_h, theta_d, phi_d)       # [B]
        qg = jnp.take(self.QT, flat, axis=1).astype(jnp.float32)    # [nb, B]
        ag = jnp.take(self.auxT[0], flat, axis=1)                   # [3, B]
        bg = jnp.take(self.auxT[1], flat, axis=1)                   # [3, B]
        mapped = self.cT @ qg                                        # [3, B]
        return (jnp.exp(mapped) * ag - bg).T                         # [B, 3]


# ---------------------------------- main -------------------------------------
if __name__ == "__main__":
    key = jax.random.PRNGKey(0)
    k_model, k_x = jax.random.split(key)

    model = PCAJax(k_model, TH=8, TD=8, PD=16, basis_num=32)

    # --- kernel output vs pure-JAX reference (loose tol: bf16 MXU path) ------
    recon = jax.block_until_ready(model.getBRDFTensor())           # [n_full, 3]
    c = model.cT.T                                                  # [nb, 3]
    masked_ref = ((jnp.exp(model.Q @ c + model.relativeOffset)
                   * (model.median + EPS) - EPS) / model.cosMap)
    full_ref = jnp.zeros((model.n_full, 3), jnp.float32).at[
        model.mask_idx].set(masked_ref)
    recon_ref = jnp.where(model.maskMap[:, None], full_ref, -1.0)
    assert recon.shape == (model.n_full, 3), recon.shape
    assert bool(jnp.allclose(recon, recon_ref, rtol=5e-2, atol=1e-3))

    # --- forward: x = [B, 3] angles (theta_h, theta_d, phi_d) ----------------
    B = 8
    kx1, kx2, kx3 = jax.random.split(k_x, 3)
    theta_h = jax.random.uniform(kx1, (B,), jnp.float32, 0.0, jnp.pi / 2)
    theta_d = jax.random.uniform(kx2, (B,), jnp.float32, 0.0, jnp.pi / 2)
    phi_d = jax.random.uniform(kx3, (B,), jnp.float32, 0.0, jnp.pi)
    x = jnp.stack([theta_h, theta_d, phi_d], axis=1)                # [8, 3]

    out = jax.block_until_ready(model.forward(x))
    assert out.shape == (B, 3), out.shape
    assert bool(jnp.all(jnp.isfinite(out)))

    # forward must agree with the full-table reference at the same rows
    flat = model._merl_flat_index(theta_h, theta_d, phi_d)
    assert bool(jnp.allclose(out, full_ref[flat], rtol=5e-2, atol=1e-3))

    print("KERNEL_OK")
</pallas_src>

<mosaic_0001>
module attributes {stable_mosaic.version = 11 : i64} {
  func.func @pca_recon_kernel(%arg0: memref<3x32xf32, #tpu.memory_space<vmem>>, %arg1: memref<32x1024xbf16, #tpu.memory_space<vmem>>, %arg2: memref<2x3x1024xf32, #tpu.memory_space<vmem>>, %arg3: memref<3x1024xf32, #tpu.memory_space<vmem>>) attributes {dimension_semantics = [], scalar_prefetch = 0 : i64, scratch_operands = 0 : i64, tpu.core_type = #tpu.core_type<tc>} {
    %c0 = arith.constant 0 : index
    %c0_0 = arith.constant 0 : index
    %0 = vector.load %arg0[%c0, %c0_0] : memref<3x32xf32, #tpu.memory_space<vmem>>, vector<3x32xf32>
    %1 = arith.truncf %0 : vector<3x32xf32> to vector<3x32xbf16>
    %c0_1 = arith.constant 0 : index
    %c0_2 = arith.constant 0 : index
    %2 = vector.load %arg1[%c0_1, %c0_2] : memref<32x1024xbf16, #tpu.memory_space<vmem>>, vector<32x1024xbf16>
    %cst = arith.constant dense<0.000000e+00> : vector<3x1024xf32>
    %3 = tpu.matmul %1, %2, %cst {dimension_numbers = #tpu.dot_dimension_numbers<[1], [0], [0], [1], [0, 0, 1, 1], [], []>} : vector<3x32xbf16>, vector<32x1024xbf16>, vector<3x1024xf32> -> vector<3x1024xf32>
    %4 = math.exp %3 : vector<3x1024xf32>
    %c0_3 = arith.constant 0 : index
    %c0_4 = arith.constant 0 : index
    %c0_5 = arith.constant 0 : index
    %5 = vector.load %arg2[%c0_3, %c0_4, %c0_5] : memref<2x3x1024xf32, #tpu.memory_space<vmem>>, vector<1x3x1024xf32>
    %6 = vector.shape_cast %5 : vector<1x3x1024xf32> to vector<3x1024xf32>
    %7 = arith.mulf %4, %6 : vector<3x1024xf32>
    %c1 = arith.constant 1 : index
    %c0_6 = arith.constant 0 : index
    %c0_7 = arith.constant 0 : index
    %8 = vector.load %arg2[%c1, %c0_6, %c0_7] : memref<2x3x1024xf32, #tpu.memory_space<vmem>>, vector<1x3x1024xf32>
    %9 = vector.shape_cast %8 : vector<1x3x1024xf32> to vector<3x1024xf32>
    %10 = arith.subf %7, %9 : vector<3x1024xf32>
    %c0_8 = arith.constant 0 : index
    %c0_9 = arith.constant 0 : index
    %11 = vector.load %arg3[%c0_8, %c0_9] : memref<3x1024xf32, #tpu.memory_space<vmem>>, vector<3x1024xf32>
    tpu.vector_store %arg3[%c0_8, %c0_9], %10 {strides = array<i32>} : memref<3x1024xf32, #tpu.memory_space<vmem>>, vector<3x1024xf32>,
    return
  }
}

</mosaic_0001>

<llo_original>
// kernel: tpu_custom_call.1
$region0: #{tpu_custom_call.1}
  #allocation0 [shape = 'u32[]', space=smem, size = 0x4, offset = 0x4, fixed_abs, tag = 'smem constant byte address 0x4 - core index']
  #allocation1 [shape = 'u32[144,128]{1,0:T(1,128)}', space=vmem, size = 0x12000, scoped, tag = 'internal scratch']
  %s0 = inlined_call_operand.vmem [shape: f32[3,32], index: 0, kind: input, shape index: {}]
  %s1 = inlined_call_operand.hbm [shape: bf16[32,1024], index: 1, kind: input, shape index: {}]
  %s2 = inlined_call_operand.vmem [shape: f32[2,3,1024], index: 2, kind: input, shape index: {}]
  %s3 = inlined_call_operand.hbm [shape: f32[3,1024], index: 3, kind: output, shape index: {}]
  %s4 = sld [smem:[#allocation0]]
  $region26: #{tpu_custom_call.1} parent=0
    _
  %s6 = ssub.s32 1, %s4
  %s7 = scalar_select 0, %s6, %s4
  $region1: #{tpu_custom_call.1} parent=0
    #allocation2 [shape = 'u8[65536]{0}', space=vmem, size = 0x10000, scoped, tag = 'input window, operand 1, single buffered']
    #allocation3 [shape = 's32[1]{0}', space=sflag, size = 0x4, scoped, tag = 'scoped memory for tpu_custom_call.1']
    #allocation4 [shape = 's32[1]{0}', space=sflag, size = 0x4, scoped, tag = 'scoped memory for tpu_custom_call.1']
    #allocation5 [shape = 'u8[16384]{0}', space=vmem, size = 0x4000, scoped, tag = 'output window, operand 0, single buffered']
    %8 = vsyncpa [#allocation3], 0
    %9 = vsyncpa [#allocation4], 0
    // Predicated region
    $region2: #{tpu_custom_call.1} parent=1 // pred_check
      _
    $region3: #{tpu_custom_call.1} parent=1 // pred_check_branch
      %11 = sbr.rel (0) target = $region5
    $region4: #{tpu_custom_call.1} parent=1 // pred_region
      _
    $region5: #{tpu_custom_call.1} parent=1 // pred_fallthru
      _
    // Predicated region
    $region6: #{tpu_custom_call.1} parent=1 // pred_check
      _
    $region7: #{tpu_custom_call.1} parent=1 // pred_check_branch
      %13 = sbr.rel (0) target = $region9
    $region8: #{tpu_custom_call.1} parent=1 // pred_region
      %s15 = ssub.s32 2048, 2048
      %16 = vsyncadd [#allocation3], %s15
      %s17 = sshll.u32 [#allocation2], 4
      %s18 = int_to_ptr.vmem [resolvable:$true] %s17
      %23 = dma.hbm_to_vmem [thread:$0]  %s1, 2048, %s18, [#allocation3], 512, 512, 32
    $region9: #{tpu_custom_call.1} parent=1 // pred_fallthru
      _
    // Predicated region
    $region10: #{tpu_custom_call.1} parent=1 // pred_check
      _
    $region11: #{tpu_custom_call.1} parent=1 // pred_check_branch
      %25 = sbr.rel (0) target = $region13
    $region12: #{tpu_custom_call.1} parent=1 // pred_region
      _
    $region13: #{tpu_custom_call.1} parent=1 // pred_fallthru
      _
    // Predicated region
    $region14: #{tpu_custom_call.1} parent=1 // pred_check
      _
    $region15: #{tpu_custom_call.1} parent=1 // pred_check_branch
      %27 = sbr.rel (0) target = $region17
    $region16: #{tpu_custom_call.1} parent=1 // pred_region
      %28 = dma.done [#allocation3], 2048
    $region17: #{tpu_custom_call.1} parent=1 // pred_fallthru
      _
    %v30 = vld [vmem:[%s0] sm:$0x7]
    %v31 = vpack.c.bf16 %v30, %v30
    %v32 = vld [vmem:[#allocation2] sm:$0xff]
    %v33 = vld [vmem:[#allocation2 + $0x8] sm:$0xff]
    %v34 = vld [vmem:[#allocation2 + $0x10] sm:$0xff]
    %v35 = vld [vmem:[#allocation2 + $0x18] sm:$0xff]
    %v36 = vld [vmem:[#allocation2 + $0x20] sm:$0xff]
    %v37 = vld [vmem:[#allocation2 + $0x28] sm:$0xff]
    %v38 = vld [vmem:[#allocation2 + $0x30] sm:$0xff]
    %v39 = vld [vmem:[#allocation2 + $0x38] sm:$0xff]
    %v40 = vld [vmem:[#allocation2 + $0x40] sm:$0xff]
    %v41 = vld [vmem:[#allocation2 + $0x48] sm:$0xff]
    %v42 = vld [vmem:[#allocation2 + $0x50] sm:$0xff]
    %v43 = vld [vmem:[#allocation2 + $0x58] sm:$0xff]
    %v44 = vld [vmem:[#allocation2 + $0x60] sm:$0xff]
    %v45 = vld [vmem:[#allocation2 + $0x68] sm:$0xff]
    %v46 = vld [vmem:[#allocation2 + $0x70] sm:$0xff]
    %v47 = vld [vmem:[#allocation2 + $0x78] sm:$0xff]
    %v64 = vunpack.c.l.b16 %v32
    %v65 = vunpack.c.h.b16 %v32
    %v66 = vunpack.c.l.b16 %v33
    %v67 = vunpack.c.h.b16 %v33
    %v68 = vunpack.c.l.b16 %v34
    %v69 = vunpack.c.h.b16 %v34
    %v70 = vunpack.c.l.b16 %v35
    %v71 = vunpack.c.h.b16 %v35
    %v72 = vunpack.c.l.b16 %v36
    %v73 = vunpack.c.h.b16 %v36
    %v74 = vunpack.c.l.b16 %v37
    %v75 = vunpack.c.h.b16 %v37
    %v76 = vunpack.c.l.b16 %v38
    %v77 = vunpack.c.h.b16 %v38
    %v78 = vunpack.c.l.b16 %v39
    %v79 = vunpack.c.h.b16 %v39
    %v80 = vunpack.c.l.b16 %v40
    %v81 = vunpack.c.h.b16 %v40
    %v82 = vunpack.c.l.b16 %v41
    %v83 = vunpack.c.h.b16 %v41
    %v84 = vunpack.c.l.b16 %v42
    %v85 = vunpack.c.h.b16 %v42
    %v86 = vunpack.c.l.b16 %v43
    %v87 = vunpack.c.h.b16 %v43
    %v88 = vunpack.c.l.b16 %v44
    %v89 = vunpack.c.h.b16 %v44
    %v90 = vunpack.c.l.b16 %v45
    %v91 = vunpack.c.h.b16 %v45
    %v92 = vunpack.c.l.b16 %v46
    %v93 = vunpack.c.h.b16 %v46
    %v94 = vunpack.c.l.b16 %v47
    %v95 = vunpack.c.h.b16 %v47
    %v96 = vpack.c.b16 %v72, %v64
    %v97 = vpack.c.b16 %v73, %v65
    %v98 = vpack.c.b16 %v74, %v66
    %v99 = vpack.c.b16 %v75, %v67
    %v100 = vpack.c.b16 %v76, %v68
    %v101 = vpack.c.b16 %v77, %v69
    %v102 = vpack.c.b16 %v78, %v70
    %v103 = vpack.c.b16 %v79, %v71
    %v104 = vpack.c.b16 %v88, %v80
    %v105 = vpack.c.b16 %v89, %v81
    %v106 = vpack.c.b16 %v90, %v82
    %v107 = vpack.c.b16 %v91, %v83
    %v108 = vpack.c.b16 %v92, %v84
    %v109 = vpack.c.b16 %v93, %v85
    %v110 = vpack.c.b16 %v94, %v86
    %v111 = vpack.c.b16 %v95, %v87
    %vm128 = vcmask 261120
    %v130 = vsel %vm128, %v31, 0
    %132 = vmatprep.subr.bf16.mxu0 0
    %133 = vmatpush1.bf16.msra.mxu0 0
    %134 = vmatprep.subr.bf16.mxu0 0
    %135 = vmatpush1.bf16.msra.mxu0 0
    %136 = vmatprep.subr.bf16.mxu0 0
    %137 = vmatpush1.bf16.msra.mxu0 0
    %138 = vmatprep.subr.bf16.mxu0 0
    %139 = vmatpush1.bf16.msra.mxu0 0
    %140 = vmatprep.subr.bf16.mxu0 0
    %141 = vmatpush1.bf16.msra.mxu0 0
    %142 = vmatprep.subr.bf16.mxu0 0
    %143 = vmatpush1.bf16.msra.mxu0 0
    %144 = vmatprep.subr.bf16.mxu0 %v105
    %145 = vmatpush1.bf16.msra.mxu0 %v104
    %146 = vmatprep.subr.bf16.mxu0 %v97
    %147 = vmatpush1.bf16.msra.mxu0 %v96
    %148 = vmatprep.subr.bf16.mxu0 0
    %149 = vmatpush2.bf16.msra.mxu0 0
    %150 = vmatprep.subr.bf16.mxu0 0
    %151 = vmatpush2.bf16.msra.mxu0 0
    %152 = vmatprep.subr.bf16.mxu0 0
    %153 = vmatpush2.bf16.msra.mxu0 0
    %154 = vmatprep.subr.bf16.mxu0 0
    %155 = vmatpush2.bf16.msra.mxu0 0
    %156 = vmatprep.subr.bf16.mxu0 0
    %157 = vmatpush2.bf16.msra.mxu0 0
    %158 = vmatprep.subr.bf16.mxu0 0
    %159 = vmatpush2.bf16.msra.mxu0 0
    %160 = vmatprep.subr.bf16.mxu0 0
    %161 = vmatpush2.bf16.msra.mxu0 0
    %162 = vmatprep.subr.bf16.mxu0 0
    %163 = vmatpush2.bf16.msra.mxu0 0
    %164 = vmatprep.mubr.bf16.mxu0 0
    %165 = vmatmul.mubr.bf16.gmra.mxu0 %v130
    %v166 = vpop.f32.mrf.mxu0
    %v167 = vadd.f32 0.0, %v166
    %v168 = vpop.f32.mrf.mxu0
    %v169 = vadd.f32 0.0, %v168
    %v170 = vpop.f32.mrf.mxu0
    %v171 = vpop.f32.mrf.mxu0
    %172 = vdwg.mxu0
    %173 = vmatprep.subr.bf16.mxu0 0
    %174 = vmatpush1.bf16.msra.mxu0 0
    %175 = vmatprep.subr.bf16.mxu0 0
    %176 = vmatpush1.bf16.msra.mxu0 0
    %177 = vmatprep.subr.bf16.mxu0 0
    %178 = vmatpush1.bf16.msra.mxu0 0
    %179 = vmatprep.subr.bf16.mxu0 0
    %180 = vmatpush1.bf16.msra.mxu0 0
    %181 = vmatprep.subr.bf16.mxu0 0
    %182 = vmatpush1.bf16.msra.mxu0 0
    %183 = vmatprep.subr.bf16.mxu0 0
    %184 = vmatpush1.bf16.msra.mxu0 0
    %185 = vmatprep.subr.bf16.mxu0 %v107
    %186 = vmatpush1.bf16.msra.mxu0 %v106
    %187 = vmatprep.subr.bf16.mxu0 %v99
    %188 = vmatpush1.bf16.msra.mxu0 %v98
    %189 = vmatprep.subr.bf16.mxu0 0
    %190 = vmatpush2.bf16.msra.mxu0 0
    %191 = vmatprep.subr.bf16.mxu0 0
    %192 = vmatpush2.bf16.msra.mxu0 0
    %193 = vmatprep.subr.bf16.mxu0 0
    %194 = vmatpush2.bf16.msra.mxu0 0
    %195 = vmatprep.subr.bf16.mxu0 0
    %196 = vmatpush2.bf16.msra.mxu0 0
    %197 = vmatprep.subr.bf16.mxu0 0
    %198 = vmatpush2.bf16.msra.mxu0 0
    %199 = vmatprep.subr.bf16.mxu0 0
    %200 = vmatpush2.bf16.msra.mxu0 0
    %201 = vmatprep.subr.bf16.mxu0 0
    %202 = vmatpush2.bf16.msra.mxu0 0
    %203 = vmatprep.subr.bf16.mxu0 0
    %204 = vmatpush2.bf16.msra.mxu0 0
    %205 = vmatprep.mubr.bf16.mxu0 0
    %206 = vmatmul.mubr.bf16.gmra.mxu0 %v130
    %v207 = vpop.f32.mrf.mxu0
    %v208 = vadd.f32 0.0, %v207
    %v209 = vpop.f32.mrf.mxu0
    %v210 = vadd.f32 0.0, %v209
    %v211 = vpop.f32.mrf.mxu0
    %v212 = vpop.f32.mrf.mxu0
    %213 = vdwg.mxu0
    %214 = vmatprep.subr.bf16.mxu0 0
    %215 = vmatpush1.bf16.msra.mxu0 0
    %216 = vmatprep.subr.bf16.mxu0 0
    %217 = vmatpush1.bf16.msra.mxu0 0
    %218 = vmatprep.subr.bf16.mxu0 0
    %219 = vmatpush1.bf16.msra.mxu0 0
    %220 = vmatprep.subr.bf16.mxu0 0
    %221 = vmatpush1.bf16.msra.mxu0 0
    %222 = vmatprep.subr.bf16.mxu0 0
    %223 = vmatpush1.bf16.msra.mxu0 0
    %224 = vmatprep.subr.bf16.mxu0 0
    %225 = vmatpush1.bf16.msra.mxu0 0
    %226 = vmatprep.subr.bf16.mxu0 %v109
    %227 = vmatpush1.bf16.msra.mxu0 %v108
    %228 = vmatprep.subr.bf16.mxu0 %v101
    %229 = vmatpush1.bf16.msra.mxu0 %v100
    %230 = vmatprep.subr.bf16.mxu0 0
    %231 = vmatpush2.bf16.msra.mxu0 0
    %232 = vmatprep.subr.bf16.mxu0 0
    %233 = vmatpush2.bf16.msra.mxu0 0
    %234 = vmatprep.subr.bf16.mxu0 0
    %235 = vmatpush2.bf16.msra.mxu0 0
    %236 = vmatprep.subr.bf16.mxu0 0
    %237 = vmatpush2.bf16.msra.mxu0 0
    %238 = vmatprep.subr.bf16.mxu0 0
    %239 = vmatpush2.bf16.msra.mxu0 0
    %240 = vmatprep.subr.bf16.mxu0 0
    %241 = vmatpush2.bf16.msra.mxu0 0
    %242 = vmatprep.subr.bf16.mxu0 0
    %243 = vmatpush2.bf16.msra.mxu0 0
    %244 = vmatprep.subr.bf16.mxu0 0
    %245 = vmatpush2.bf16.msra.mxu0 0
    %246 = vmatprep.mubr.bf16.mxu0 0
    %247 = vmatmul.mubr.bf16.gmra.mxu0 %v130
    %v248 = vpop.f32.mrf.mxu0
    %v249 = vadd.f32 0.0, %v248
    %v250 = vpop.f32.mrf.mxu0
    %v251 = vadd.f32 0.0, %v250
    %v252 = vpop.f32.mrf.mxu0
    %v253 = vpop.f32.mrf.mxu0
    %254 = vdwg.mxu0
    %255 = vmatprep.subr.bf16.mxu0 0
    %256 = vmatpush1.bf16.msra.mxu0 0
    %257 = vmatprep.subr.bf16.mxu0 0
    %258 = vmatpush1.bf16.msra.mxu0 0
    %259 = vmatprep.subr.bf16.mxu0 0
    %260 = vmatpush1.bf16.msra.mxu0 0
    %261 = vmatprep.subr.bf16.mxu0 0
    %262 = vmatpush1.bf16.msra.mxu0 0
    %263 = vmatprep.subr.bf16.mxu0 0
    %264 = vmatpush1.bf16.msra.mxu0 0
    %265 = vmatprep.subr.bf16.mxu0 0
    %266 = vmatpush1.bf16.msra.mxu0 0
    %267 = vmatprep.subr.bf16.mxu0 %v111
    %268 = vmatpush1.bf16.msra.mxu0 %v110
    %269 = vmatprep.subr.bf16.mxu0 %v103
    %270 = vmatpush1.bf16.msra.mxu0 %v102
    %271 = vmatprep.subr.bf16.mxu0 0
    %272 = vmatpush2.bf16.msra.mxu0 0
    %273 = vmatprep.subr.bf16.mxu0 0
    %274 = vmatpush2.bf16.msra.mxu0 0
    %275 = vmatprep.subr.bf16.mxu0 0
    %276 = vmatpush2.bf16.msra.mxu0 0
    %277 = vmatprep.subr.bf16.mxu0 0
    %278 = vmatpush2.bf16.msra.mxu0 0
    %279 = vmatprep.subr.bf16.mxu0 0
    %280 = vmatpush2.bf16.msra.mxu0 0
    %281 = vmatprep.subr.bf16.mxu0 0
    %282 = vmatpush2.bf16.msra.mxu0 0
    %283 = vmatprep.subr.bf16.mxu0 0
    %284 = vmatpush2.bf16.msra.mxu0 0
    %285 = vmatprep.subr.bf16.mxu0 0
    %286 = vmatpush2.bf16.msra.mxu0 0
    %287 = vmatprep.mubr.bf16.mxu0 0
    %288 = vmatmul.mubr.bf16.gmra.mxu0 %v130
    %v289 = vpop.f32.mrf.mxu0
    %v290 = vadd.f32 0.0, %v289
    %v291 = vpop.f32.mrf.mxu0
    %v292 = vadd.f32 0.0, %v291
    %v293 = vpop.f32.mrf.mxu0
    %v294 = vpop.f32.mrf.mxu0
    %295 = vdwg.mxu0
    %v296 = vmul.f32 %v167, 1.442695
    %v297 = vpow.pop %v296
    %v298 = vmul.f32 %v169, 1.442695
    %v299 = vpow.pop %v298
    %v300 = vmul.f32 %v208, 1.442695
    %v301 = vpow.pop %v300
    %v302 = vmul.f32 %v210, 1.442695
    %v303 = vpow.pop %v302
    %v304 = vmul.f32 %v249, 1.442695
    %v305 = vpow.pop %v304
    %v306 = vmul.f32 %v251, 1.442695
    %v307 = vpow.pop %v306
    %v308 = vmul.f32 %v290, 1.442695
    %v309 = vpow.pop %v308
    %v310 = vmul.f32 %v292, 1.442695
    %v311 = vpow.pop %v310
    %v312 = vld [vmem:[%s2] sm:$0x77]
    %v313 = vld [vmem:[%s2 + $0x8] sm:$0x77]
    %v314 = vld [vmem:[%s2 + $0x10] sm:$0x77]
    %v315 = vld [vmem:[%s2 + $0x18] sm:$0x77]
    %v320 = vcombine.high %v312, %v312
    %v321 = vcombine.high %v313, %v313
    %v322 = vcombine.high %v314, %v314
    %v323 = vcombine.high %v315, %v315
    %v328 = vmul.f32 %v297, %v312
    %v329 = vmul.f32 %v299, %v320
    %v330 = vmul.f32 %v301, %v313
    %v331 = vmul.f32 %v303, %v321
    %v332 = vmul.f32 %v305, %v314
    %v333 = vmul.f32 %v307, %v322
    %v334 = vmul.f32 %v309, %v315
    %v335 = vmul.f32 %v311, %v323
    %s336 = scalar_lea.vmem %s2, 32
    %v337 = vld [vmem:[%s336] sm:$0x77]
    %v338 = vld [vmem:[%s336 + $0x8] sm:$0x77]
    %v339 = vld [vmem:[%s336 + $0x10] sm:$0x77]
    %v340 = vld [vmem:[%s336 + $0x18] sm:$0x77]
    %v345 = vcombine.high %v337, %v337
    %v346 = vcombine.high %v338, %v338
    %v347 = vcombine.high %v339, %v339
    %v348 = vcombine.high %v340, %v340
    %v353 = vsub.f32 %v328, %v337
    %v354 = vsub.f32 %v329, %v345
    %v355 = vsub.f32 %v330, %v338
    %v356 = vsub.f32 %v331, %v346
    %v357 = vsub.f32 %v332, %v339
    %v358 = vsub.f32 %v333, %v347
    %v359 = vsub.f32 %v334, %v340
    %v360 = vsub.f32 %v335, %v348
    %v369 = vcombine.low %v353, %v354
    %v370 = vcombine.low %v355, %v356
    %v371 = vcombine.low %v357, %v358
    %v372 = vcombine.low %v359, %v360
    %377 = vst [vmem:[#allocation5] sm:$0x77] %v369
    %378 = vst [vmem:[#allocation5 + $0x8] sm:$0x77] %v370
    %379 = vst [vmem:[#allocation5 + $0x10] sm:$0x77] %v371
    %380 = vst [vmem:[#allocation5 + $0x18] sm:$0x77] %v372
    // Predicated region
    $region18: #{tpu_custom_call.1} parent=1 // pred_check
      _
    $region19: #{tpu_custom_call.1} parent=1 // pred_check_branch
      %382 = sbr.rel (0) target = $region21
    $region20: #{tpu_custom_call.1} parent=1 // pred_region
      %s384 = ssub.s32 512, 512
      %385 = vsyncadd [#allocation4], %s384
      %s387 = sshll.u32 [#allocation5], 4
      %s388 = int_to_ptr.vmem [resolvable:$true] %s387
      %390 = dma.vmem_to_hbm [thread:$0]  %s388, 512, %s3, [#allocation4]
    $region21: #{tpu_custom_call.1} parent=1 // pred_fallthru
      _
    // Predicated region
    $region22: #{tpu_custom_call.1} parent=1 // pred_check
      _
    $region23: #{tpu_custom_call.1} parent=1 // pred_check_branch
      %392 = sbr.rel (0) target = $region25
    $region24: #{tpu_custom_call.1} parent=1 // pred_region
      %393 = dma.done [#allocation4], 512
    $region25: #{tpu_custom_call.1} parent=1 // pred_fallthru
      _
    %394 = vsyncpa [#allocation3], 1
    %395 = vsyncpa [#allocation4], 1

</llo_original>
